<compile_context>
chip_gen: v6e
topology: v6e:2x2x1
jax: 0.10.0
libtpu: 0.0.40
codegen_flags: <defaults>
</compile_context>

<pallas_src>
import math

import jax
import jax.numpy as jnp
import numpy as np
from jax.experimental import pallas as pl
from jax.experimental.pallas import tpu as pltpu

_BN_EPS = 1e-5  # torch.nn.BatchNorm3d default
_INV_SQRT2 = 0.7071067811865476


def _round_up(x, m):
    return ((x + m - 1) // m) * m


def _tile_plan(s, cap):
    """Balanced lane tiles: tile_s is a multiple of 128; S is padded to n_s * tile_s."""
    cap = max(128, (cap // 128) * 128)
    n_s = -(-s // cap)                       # number of S tiles (cdiv)
    tile_s = _round_up(-(-s // n_s), 128)    # per-tile lanes, 128-aligned
    return tile_s, n_s, n_s * tile_s


def _gelu_exact(z):
    """0.5*z*(1+erf(z/sqrt(2))) via A&S 7.1.26 (|erf err| < 1.5e-7), branch-free:
    gelu(z) = relu(z) - 0.5*|z| * poly(t) * exp(-u^2), t = 1/(1+p*u), u = |z|/sqrt(2)."""
    a1, a2, a3, a4, a5 = (0.254829592, -0.284496736, 1.421413741,
                          -1.453152027, 1.061405429)
    p = 0.3275911
    az = jnp.abs(z)
    u = az * _INV_SQRT2
    # exact reciprocal: the approx EUP reciprocal's ~1e-3 rel error failed the accuracy check
    t = 1.0 / (1.0 + p * u)
    poly = ((((a5 * t + a4) * t + a3) * t + a2) * t + a1) * t
    tail = poly * jnp.exp(-(u * u))
    return jnp.maximum(z, 0.0) - 0.5 * az * tail


def _stats_kernel(x_ref, sum_ref, gram_ref):
    """Pass 1: exact input moments per batch element (sum over lanes + Gram over lanes)."""
    @pl.when(pl.program_id(1) == 0)
    def _():
        sum_ref[...] = jnp.zeros_like(sum_ref)
        gram_ref[...] = jnp.zeros_like(gram_ref)

    x = x_ref[0]                                              # (2*Cin, tile_s)
    sum_ref[0] += jnp.sum(x, axis=1, keepdims=True)           # (2*Cin, 1)
    # Gram = x @ x^T, contracting the lane axis directly (no explicit transpose).
    gram_ref[0] += jax.lax.dot_general(
        x, x, (((1,), (1,)), ((), ())), preferred_element_type=jnp.float32)


def _apply_kernel(w_ref, scale_ref, shift_ref, x_ref, o_ref):
    """Pass 2: fused complex 1x1x1 conv + folded BN scale/shift + GELU, lane-dense store."""
    x = x_ref[0]                                              # (2*Cin, tile_s)
    y = jnp.dot(w_ref[...], x, preferred_element_type=jnp.float32)   # (2*Cp, tile_s)
    z = y * scale_ref[...] + shift_ref[...]                   # folded BatchNorm (bias cancels)
    o_ref[0] = _gelu_exact(z)


def _pad_vec(v, cp, fill):
    v = v.reshape(-1).astype(jnp.float32)
    c = v.shape[0]
    if cp == c:
        return v
    return jnp.concatenate([v, jnp.full((cp - c,), fill, jnp.float32)])


def conv_bn_activation(x, wr, wi, br, bi, gr, gi, betar, betai, *, max_tile_s=16384):
    """x: complex64 (N, Cin, D, H, W).  Returns complex64 (N, Cout, D, H, W).

    wr, wi: (Cin, Cout) conv weights; br, bi: (1, Cout) conv bias (cancels inside training-mode BN);
    gr, gi / betar, betai: (1, Cout) BatchNorm affine params per component.
    """
    N, Cin, D, H, W = x.shape
    Cout = wr.shape[1]
    S = D * H * W
    Cp = _round_up(Cout, 8)            # sublane-aligned output rows per real/imag half
    C2i = 2 * Cin
    C2o = 2 * Cp

    tile_s, n_s, s_pad = _tile_plan(S, max_tile_s)

    # channels-on-sublanes / spatial-on-lanes; real & imag stacked on the channel axis.
    # (NCDHW already has spatial contiguous, so the reshape is a free view; only the real/imag
    #  extraction + concat copies, as one fused XLA pass.)
    xr = jnp.real(x).reshape(N, Cin, S)
    xi = jnp.imag(x).reshape(N, Cin, S)
    x_cat = jnp.concatenate([xr, xi], axis=1).astype(jnp.float32)     # (N, 2*Cin, S)
    if s_pad != S:
        x_cat = jnp.pad(x_cat, ((0, 0), (0, 0), (0, s_pad - S)))      # zero pad: exact for moments

    # Fused complex-matmul block weight:  [yr; yi] = W_full @ [xr; xi]
    wrT = wr.T.astype(jnp.float32)
    wiT = wi.T.astype(jnp.float32)
    top = jnp.concatenate([wrT, -wiT], axis=1)      # (Cout, 2*Cin) -> yr rows
    bot = jnp.concatenate([wiT, wrT], axis=1)       # (Cout, 2*Cin) -> yi rows
    if Cp != Cout:
        zpad = jnp.zeros((Cp - Cout, C2i), jnp.float32)
        top = jnp.concatenate([top, zpad], axis=0)
        bot = jnp.concatenate([bot, zpad], axis=0)
    w_full = jnp.concatenate([top, bot], axis=0)    # (2*Cp, 2*Cin)

    x_spec = pl.BlockSpec((1, C2i, tile_s), lambda n, s: (n, 0, s))

    # ---- pass 1: exact input moments; per-N partials so v7x megacore splits the work ----
    psum, pgram = pl.pallas_call(
        _stats_kernel,
        out_shape=(jax.ShapeDtypeStruct((N, C2i, 1), jnp.float32),
                   jax.ShapeDtypeStruct((N, C2i, C2i), jnp.float32)),
        grid=(N, n_s),
        in_specs=[x_spec],
        out_specs=(pl.BlockSpec((1, C2i, 1), lambda n, s: (n, 0, 0)),
                   pl.BlockSpec((1, C2i, C2i), lambda n, s: (n, 0, 0))),
        compiler_params=pltpu.CompilerParams(
            dimension_semantics=("parallel", "arbitrary")),
    )(x_cat)

    # ---- fold BN (training-mode batch stats, biased variance) into scale/shift ----
    m_total = float(N * S)
    sum_x = jnp.sum(psum[:, :, 0], axis=0)                       # (2*Cin,)
    gram = jnp.sum(pgram, axis=0)                                # (2*Cin, 2*Cin)
    # y = W_full @ x exactly (conv bias shifts mean and value identically -> cancels in BN), so:
    mean_y = (w_full @ sum_x) / m_total                          # (2*Cp,)
    ey2 = jnp.sum((w_full @ gram) * w_full, axis=1) / m_total    # diag(W E[xx^T] W^T)
    var_y = jnp.maximum(ey2 - mean_y * mean_y, 0.0)
    # TODO(synk): single-pass E[y^2]-E[y]^2 in f32; use compensated/two-pass stats for N*S >~ 1e7.

    gamma = jnp.concatenate([_pad_vec(gr, Cp, 1.0), _pad_vec(gi, Cp, 1.0)])
    beta = jnp.concatenate([_pad_vec(betar, Cp, 0.0), _pad_vec(betai, Cp, 0.0)])
    scale = gamma * jax.lax.rsqrt(var_y + _BN_EPS)
    shift = beta - mean_y * scale
    scale = scale.reshape(C2o, 1).astype(jnp.float32)
    shift = shift.reshape(C2o, 1).astype(jnp.float32)

    # ---- pass 2: conv + folded BN + GELU, lane-dense, megacore-parallel over (N, S) ----
    xb = C2i * tile_s * 4
    ob = C2o * tile_s * 4
    vmem_est = 2 * (xb + ob) + 6 * ob + 2 * (C2o * C2i + 2 * C2o) * 4
    # >= 32 MiB so large tiles clear v5e's 16 MiB scoped default; capped under v7x's 64 MiB VMEM.
    vmem_limit = int(min(56 << 20, max(32 << 20, 2 * vmem_est)))

    out_full = pl.pallas_call(
        _apply_kernel,
        out_shape=jax.ShapeDtypeStruct((N, C2o, s_pad), jnp.float32),
        grid=(N, n_s),
        in_specs=[pl.BlockSpec((C2o, C2i), lambda n, s: (0, 0)),
                  pl.BlockSpec((C2o, 1), lambda n, s: (0, 0)),
                  pl.BlockSpec((C2o, 1), lambda n, s: (0, 0)),
                  x_spec],
        out_specs=pl.BlockSpec((1, C2o, tile_s), lambda n, s: (n, 0, s)),
        compiler_params=pltpu.CompilerParams(
            dimension_semantics=("parallel", "parallel"),
            vmem_limit_bytes=vmem_limit),
    )(w_full, scale, shift, x_cat)

    out_r = out_full[:, :Cout, :S].reshape(N, Cout, D, H, W)
    out_i = out_full[:, Cp:Cp + Cout, :S].reshape(N, Cout, D, H, W)
    return jax.lax.complex(out_r, out_i)


def _reference(x, wr, wi, br, bi, gr, gi, betar, betai):
    """Pure-JAX reference of the same semantics (exact erf GELU)."""
    N, Cin, D, H, W = x.shape
    Cout = wr.shape[1]
    xr = jnp.transpose(jnp.real(x), (0, 2, 3, 4, 1)).reshape(-1, Cin).astype(jnp.float32)
    xi = jnp.transpose(jnp.imag(x), (0, 2, 3, 4, 1)).reshape(-1, Cin).astype(jnp.float32)
    yr = xr @ wr - xi @ wi + br
    yi = xr @ wi + xi @ wr + bi

    def bn(y, g, b):
        m = y.mean(0, keepdims=True)
        v = ((y - m) ** 2).mean(0, keepdims=True)
        return (y - m) / jnp.sqrt(v + _BN_EPS) * g + b

    yr = bn(yr, gr, betar)
    yi = bn(yi, gi, betai)

    def gelu(z):
        return 0.5 * z * (1.0 + jax.scipy.special.erf(z / math.sqrt(2.0)))

    yr, yi = gelu(yr), gelu(yi)
    yr = jnp.transpose(yr.reshape(N, D, H, W, Cout), (0, 4, 1, 2, 3))
    yi = jnp.transpose(yi.reshape(N, D, H, W, Cout), (0, 4, 1, 2, 3))
    return jax.lax.complex(yr, yi)


if __name__ == "__main__":
    def run_case(key, N, Cin, Cout, D, H, W, max_tile_s=16384):
        ks = jax.random.split(key, 10)
        xr0 = jax.random.normal(ks[0], (N, Cin, D, H, W), jnp.float32)
        xi0 = jax.random.normal(ks[1], (N, Cin, D, H, W), jnp.float32)
        x = jax.lax.complex(xr0, xi0)  # complex64 NCDHW, as the PyTorch module expects

        # Conv3d(Cin, Cout, kernel_size=1) weights: (Cout, Cin, 1, 1, 1) stored as (Cin, Cout)
        bound = 1.0 / math.sqrt(Cin)   # fan_in = Cin * 1 * 1 * 1
        wr = jax.random.uniform(ks[2], (Cin, Cout), jnp.float32, -bound, bound)
        wi = jax.random.uniform(ks[3], (Cin, Cout), jnp.float32, -bound, bound)
        br = jax.random.uniform(ks[4], (1, Cout), jnp.float32, -bound, bound)
        bi = jax.random.uniform(ks[5], (1, Cout), jnp.float32, -bound, bound)

        # BatchNorm3d affine params (non-default values to exercise the folded scale/shift path)
        gr = 1.0 + 0.1 * jax.random.normal(ks[6], (1, Cout), jnp.float32)
        gi = 1.0 + 0.1 * jax.random.normal(ks[7], (1, Cout), jnp.float32)
        betar = 0.1 * jax.random.normal(ks[8], (1, Cout), jnp.float32)
        betai = 0.1 * jax.random.normal(ks[9], (1, Cout), jnp.float32)

        out = conv_bn_activation(x, wr, wi, br, bi, gr, gi, betar, betai,
                                 max_tile_s=max_tile_s)
        out = jax.block_until_ready(out)
        ref = _reference(x, wr, wi, br, bi, gr, gi, betar, betai)
        np.testing.assert_allclose(np.asarray(jnp.real(out)), np.asarray(jnp.real(ref)),
                                   rtol=1e-3, atol=1e-3)
        np.testing.assert_allclose(np.asarray(jnp.imag(out)), np.asarray(jnp.imag(ref)),
                                   rtol=1e-3, atol=1e-3)

    key = jax.random.PRNGKey(0)
    k1, k2, k3 = jax.random.split(key, 3)

    # Main config: N=2, Cin=4, Cout=8, 8x8x8 spatial (S=512, one lane tile per batch element).
    run_case(k1, 2, 4, 8, 8, 8, 8)
    # Force multiple S tiles to exercise the tiled moment accumulation + tiled apply path.
    run_case(k2, 2, 4, 8, 8, 8, 8, max_tile_s=128)
    # Non-128-divisible S (lane padding path) + non-8-aligned Cout (padded output rows).
    run_case(k3, 1, 3, 6, 5, 6, 7)

    print("KERNEL_OK")
</pallas_src>

<mosaic_0001>
module attributes {stable_mosaic.version = 11 : i64} {
  func.func @_stats_kernel(%arg0: i32, %arg1: i32, %arg2: memref<1x8x512xf32, #tpu.memory_space<vmem>>, %arg3: memref<1x8x1xf32, #tpu.memory_space<vmem>>, %arg4: memref<1x8x8xf32, #tpu.memory_space<vmem>>) attributes {dimension_semantics = [#tpu.dimension_semantics<parallel>, #tpu.dimension_semantics<arbitrary>], iteration_bounds = array<i64: 2, 1>, scalar_prefetch = 0 : i64, scratch_operands = 0 : i64, tpu.core_type = #tpu.core_type<tc>, window_params = [{transform_indices = @transform_0, window_bounds = array<i64: 1, 8, 512>}, {transform_indices = @transform_1, window_bounds = array<i64: 1, 8, 1>}, {transform_indices = @transform_2, window_bounds = array<i64: 1, 8, 8>}]} {
    %c0_i32 = arith.constant 0 : i32
    %0 = arith.cmpi eq, %arg1, %c0_i32 : i32
    %1 = arith.extui %0 : i1 to i32
    %c0_i32_0 = arith.constant 0 : i32
    %2 = arith.cmpi ne, %1, %c0_i32_0 : i32
    scf.if %2 {
      %cst_16 = arith.constant 0.000000e+00 : f32
      %20 = vector.broadcast %cst_16 : f32 to vector<1x8x1xf32>
      %c0_17 = arith.constant 0 : index
      %c0_18 = arith.constant 0 : index
      %c0_19 = arith.constant 0 : index
      %21 = vector.load %arg3[%c0_17, %c0_18, %c0_19] : memref<1x8x1xf32, #tpu.memory_space<vmem>>, vector<1x8x1xf32>
      tpu.vector_store %arg3[%c0_17, %c0_18, %c0_19], %20 {strides = array<i32>} : memref<1x8x1xf32, #tpu.memory_space<vmem>>, vector<1x8x1xf32>,
      %cst_20 = arith.constant 0.000000e+00 : f32
      %22 = vector.broadcast %cst_20 : f32 to vector<1x8x8xf32>
      %c0_21 = arith.constant 0 : index
      %c0_22 = arith.constant 0 : index
      %c0_23 = arith.constant 0 : index
      %23 = vector.load %arg4[%c0_21, %c0_22, %c0_23] : memref<1x8x8xf32, #tpu.memory_space<vmem>>, vector<1x8x8xf32>
      tpu.vector_store %arg4[%c0_21, %c0_22, %c0_23], %22 {strides = array<i32>} : memref<1x8x8xf32, #tpu.memory_space<vmem>>, vector<1x8x8xf32>,
    } else {
    }
    %c0 = arith.constant 0 : index
    %c0_1 = arith.constant 0 : index
    %c0_2 = arith.constant 0 : index
    %3 = vector.load %arg2[%c0, %c0_1, %c0_2] : memref<1x8x512xf32, #tpu.memory_space<vmem>>, vector<1x8x512xf32>
    %4 = vector.shape_cast %3 : vector<1x8x512xf32> to vector<8x512xf32>
    %c0_3 = arith.constant 0 : index
    %c0_4 = arith.constant 0 : index
    %c0_5 = arith.constant 0 : index
    %5 = vector.load %arg3[%c0_3, %c0_4, %c0_5] : memref<1x8x1xf32, #tpu.memory_space<vmem>>, vector<1x8x1xf32>
    %6 = vector.shape_cast %5 : vector<1x8x1xf32> to vector<8x1xf32>
    %cst = arith.constant dense<0.000000e+00> : vector<8xf32>
    %7 = vector.multi_reduction <add>, %4, %cst [1] : vector<8x512xf32> to vector<8xf32>
    %8 = vector.shape_cast %7 : vector<8xf32> to vector<8x1xf32>
    %9 = arith.addf %6, %8 : vector<8x1xf32>
    %c0_6 = arith.constant 0 : index
    %c0_7 = arith.constant 0 : index
    %c0_8 = arith.constant 0 : index
    %10 = vector.load %arg3[%c0_6, %c0_7, %c0_8] : memref<1x8x1xf32, #tpu.memory_space<vmem>>, vector<1x8x1xf32>
    %11 = vector.shape_cast %10 : vector<1x8x1xf32> to vector<8x1xf32>
    %12 = vector.shape_cast %9 : vector<8x1xf32> to vector<1x8x1xf32>
    tpu.vector_store %arg3[%c0_6, %c0_7, %c0_8], %12 {strides = array<i32>} : memref<1x8x1xf32, #tpu.memory_space<vmem>>, vector<1x8x1xf32>,
    %c0_9 = arith.constant 0 : index
    %c0_10 = arith.constant 0 : index
    %c0_11 = arith.constant 0 : index
    %13 = vector.load %arg4[%c0_9, %c0_10, %c0_11] : memref<1x8x8xf32, #tpu.memory_space<vmem>>, vector<1x8x8xf32>
    %14 = vector.shape_cast %13 : vector<1x8x8xf32> to vector<8x8xf32>
    %cst_12 = arith.constant dense<0.000000e+00> : vector<8x8xf32>
    %15 = tpu.matmul %4, %4, %cst_12 {dimension_numbers = #tpu.dot_dimension_numbers<[1], [1], [0], [0], [0, 0, 1, 0], [], []>} : vector<8x512xf32>, vector<8x512xf32>, vector<8x8xf32> -> vector<8x8xf32>
    %16 = arith.addf %14, %15 : vector<8x8xf32>
    %c0_13 = arith.constant 0 : index
    %c0_14 = arith.constant 0 : index
    %c0_15 = arith.constant 0 : index
    %17 = vector.load %arg4[%c0_13, %c0_14, %c0_15] : memref<1x8x8xf32, #tpu.memory_space<vmem>>, vector<1x8x8xf32>
    %18 = vector.shape_cast %17 : vector<1x8x8xf32> to vector<8x8xf32>
    %19 = vector.shape_cast %16 : vector<8x8xf32> to vector<1x8x8xf32>
    tpu.vector_store %arg4[%c0_13, %c0_14, %c0_15], %19 {strides = array<i32>} : memref<1x8x8xf32, #tpu.memory_space<vmem>>, vector<1x8x8xf32>,
    return
  }
  func.func @transform_0(%arg0: i32, %arg1: i32) -> (i32, i32, i32) {
    %c0_i32 = arith.constant 0 : i32
    %c0_i32_0 = arith.constant 0 : i32
    return %arg0, %c0_i32, %arg1 : i32, i32, i32
  }
  func.func @transform_1(%arg0: i32, %arg1: i32) -> (i32, i32, i32) {
    %c0_i32 = arith.constant 0 : i32
    %c0_i32_0 = arith.constant 0 : i32
    %c0_i32_1 = arith.constant 0 : i32
    return %arg0, %c0_i32, %c0_i32_0 : i32, i32, i32
  }
  func.func @transform_2(%arg0: i32, %arg1: i32) -> (i32, i32, i32) {
    %c0_i32 = arith.constant 0 : i32
    %c0_i32_0 = arith.constant 0 : i32
    %c0_i32_1 = arith.constant 0 : i32
    return %arg0, %c0_i32, %c0_i32_0 : i32, i32, i32
  }
}

</mosaic_0001>

<llo_original>
// kernel: tpu_custom_call.1
$region0: #{tpu_custom_call.1}
  #allocation0 [shape = 'u32[]', space=smem, size = 0x4, offset = 0x4, fixed_abs, tag = 'smem constant byte address 0x4 - core index']
  #allocation1 [shape = 'u32[144,128]{1,0:T(1,128)}', space=vmem, size = 0x12000, scoped, tag = 'internal scratch']
  %s0 = inlined_call_operand.hbm [shape: f32[2,8,512], index: 0, kind: input, shape index: {}]
  %s1 = inlined_call_operand.vmem [shape: f32[2,8,1], index: 1, kind: output, shape index: {0}]
  %s2 = inlined_call_operand.hbm [shape: f32[2,8,8], index: 2, kind: output, shape index: {1}]
  %3 = xla_tuple %s1, %s2
  %s4 = sld [smem:[#allocation0]]
  $region53: #{tpu_custom_call.1} parent=0
    _
  %s6 = ssub.s32 1, %s4
  %s7 = scalar_select 0, %s6, %s4
  $region1: #{tpu_custom_call.1} parent=0
    #allocation2 [shape = 'u8[32768]{0}', space=vmem, size = 0x8000, scoped, tag = 'input window, operand 0']
    #allocation3 [shape = 's32[2]{0}', space=sflag, size = 0x8, scoped, tag = 'scoped memory for tpu_custom_call.1']
    #allocation4 [shape = 's32[2]{0}', space=sflag, size = 0x8, scoped, tag = 'scoped memory for tpu_custom_call.1']
    #allocation5 [shape = 'u8[8192]{0}', space=vmem, size = 0x2000, scoped, tag = 'output window, operand 1']
    %8 = vsyncpa [#allocation3], 0
    %s9 = scalar_lea.sflag [#allocation3], 1
    %10 = vsyncpa %s9, 0
    %11 = vsyncpa [#allocation4], 0
    %s12 = scalar_lea.sflag [#allocation4], 1
    %13 = vsyncpa %s12, 0
    loop: start=0, step=1, limit=4
    $region2: #{tpu_custom_call.1} parent=1 // loop_pre_header
      _
    $region3: #{tpu_custom_call.1} parent=1 // loop_header
      %s15 = sphi 0, %s19
      %p16 = scmp.ge.s32.totalorder %s15, 4
      %s22 = sphi 0, %s34
      %s23 = sphi 0, %s30
      %s24 = sphi 0, %s22
      %s25 = sphi 0, %s23
      %s26 = sphi 0, %s24
      %s27 = sphi 0, %s25
      %s39 = sphi 0, %s41
      %s42 = sphi 0, %s39
      %s43 = sphi 0, %s42
      %s59 = sphi 0, %s43
      %s65 = sphi 0, %s67
      %s68 = sphi 0, %s65
      %s69 = sphi 0, %s68
      %s85 = sphi 0, %s69
      %s91 = sphi 0, %s93
      %s94 = sphi 0, %s91
      %s95 = sphi 0, %s94
      %s111 = sphi 0, %s95
    $region4: #{tpu_custom_call.1} parent=1 // loop_header_branch
      %18 = sbr.rel (%p16) target = $region8
    $region5: #{tpu_custom_call.1} parent=1 // loop_body
      %s20 = ssub.s32 %s15, 1
      %s21 = ssub.s32 %s15, 2
      %s28 = sadd.s32 1, %s23
      %p29 = scmp.ge.s32.totalorder %s28, 1
      %s30 = scalar_select %p29, 0, %s28
      %s31 = sadd.s32 1, %s22
      %s32 = scalar_select %p29, %s31, %s22
      %p33 = scmp.ge.s32.totalorder %s32, 2
      %s34 = scalar_select %p33, 0, %s32
      %s35 = ssub.s32 %s22, %s34
      %s36 = ssub.s32 %s23, %s30
      %s37 = sor.u32 %s35, %s36
      %p38 = scmp.eq.s32.totalorder %s37, 0
      %s40 = sadd.s32 %s39, 1
      %s41 = scalar_select %p38, %s39, %s40
      %p44 = pneg %p38
      %p45 = scmp.eq.s32.totalorder %s15, 1
      %p46 = por %p44, %p45
      %p47 = scmp.ne.s32.totalorder %s39, %s42
      %p48 = scmp.eq.s32.totalorder %s15, 0
      %p49 = por %p47, %p48
      %p50 = scmp.ne.s32.totalorder %s39, %s42
      %p51 = scmp.eq.s32.totalorder %s20, 1
      %p52 = por %p50, %p51
      %p53 = scmp.ne.s32.totalorder %s42, %s43
      %p54 = scmp.eq.s32.totalorder %s20, 0
      %p55 = por %p53, %p54
      %p56 = scmp.ne.s32.totalorder %s42, %s43
      %p57 = scmp.eq.s32.totalorder %s21, 1
      %p58 = por %p56, %p57
      %p60 = scmp.ne.s32.totalorder %s43, %s59
      %p61 = scmp.eq.s32.totalorder %s21, 0
      %p62 = por %p60, %p61
      %s63 = ssub.s32 %s22, %s34
      %p64 = scmp.eq.s32.totalorder %s63, 0
      %s66 = sadd.s32 %s65, 1
      %s67 = scalar_select %p64, %s65, %s66
      %p70 = pneg %p64
      %p71 = scmp.eq.s32.totalorder %s15, 1
      %p72 = por %p70, %p71
      %p73 = scmp.ne.s32.totalorder %s65, %s68
      %p74 = scmp.eq.s32.totalorder %s15, 0
      %p75 = por %p73, %p74
      %p76 = scmp.ne.s32.totalorder %s65, %s68
      %p77 = scmp.eq.s32.totalorder %s20, 1
      %p78 = por %p76, %p77
      %p79 = scmp.ne.s32.totalorder %s68, %s69
      %p80 = scmp.eq.s32.totalorder %s20, 0
      %p81 = por %p79, %p80
      %p82 = scmp.ne.s32.totalorder %s68, %s69
      %p83 = scmp.eq.s32.totalorder %s21, 1
      %p84 = por %p82, %p83
      %p86 = scmp.ne.s32.totalorder %s69, %s85
      %p87 = scmp.eq.s32.totalorder %s21, 0
      %p88 = por %p86, %p87
      %s89 = ssub.s32 %s22, %s34
      %p90 = scmp.eq.s32.totalorder %s89, 0
      %s92 = sadd.s32 %s91, 1
      %s93 = scalar_select %p90, %s91, %s92
      %p96 = pneg %p90
      %p97 = scmp.eq.s32.totalorder %s15, 1
      %p98 = por %p96, %p97
      %p99 = scmp.ne.s32.totalorder %s91, %s94
      %p100 = scmp.eq.s32.totalorder %s15, 0
      %p101 = por %p99, %p100
      %p102 = scmp.ne.s32.totalorder %s91, %s94
      %p103 = scmp.eq.s32.totalorder %s20, 1
      %p104 = por %p102, %p103
      %p105 = scmp.ne.s32.totalorder %s94, %s95
      %p106 = scmp.eq.s32.totalorder %s20, 0
      %p107 = por %p105, %p106
      %p108 = scmp.ne.s32.totalorder %s94, %s95
      %p109 = scmp.eq.s32.totalorder %s21, 1
      %p110 = por %p108, %p109
      %p112 = scmp.ne.s32.totalorder %s95, %s111
      %p113 = scmp.eq.s32.totalorder %s21, 0
      %p114 = por %p112, %p113
      %p115 = scmp.le.s32.totalorder 1, %s15
      %p116 = scmp.lt.s32.totalorder %s15, 3
      %p117 = pnand %p115, %p116
      %p118 = pneg %p117
      // Predicated region
      $region9: #{tpu_custom_call.1} parent=5 // pred_check
        _
      $region10: #{tpu_custom_call.1} parent=5 // pred_check_branch
        %120 = sbr.rel (%p117) target = $region12
      $region11: #{tpu_custom_call.1} parent=5 // pred_region
        %s121 = ssub.s32 %s15, 1
      $region12: #{tpu_custom_call.1} parent=5 // pred_fallthru
        _
      %p122 = scmp.lt.s32.totalorder %s15, 2
      // Predicated region
      $region13: #{tpu_custom_call.1} parent=5 // pred_check
        %p123 = pneg %p122
      $region14: #{tpu_custom_call.1} parent=5 // pred_check_branch
        %125 = sbr.rel (%p123) target = $region16
      $region15: #{tpu_custom_call.1} parent=5 // pred_region
        // Predicated region
        $region17: #{tpu_custom_call.1} parent=15 // pred_check
          %p126 = pneg %p49
        $region18: #{tpu_custom_call.1} parent=15 // pred_check_branch
          %128 = sbr.rel (%p126) target = $region20
        $region19: #{tpu_custom_call.1} parent=15 // pred_region
          %s129 = sand.u32 %s39, 1
          %s130 = scalar_lea.sflag [#allocation3], %s129
          %s131 = sand.u32 %s39, 1
          %s132 = smul.addr %s131, 32
          %s133 = scalar_lea.vmem [#allocation2], %s132
          %s134 = smul.u32 4, %s23
          %s136 = ssub.s32 512, 512
          %137 = vsyncadd %s130, %s136
          %s138 = smul.addr %s22, 4
          %s139 = sadd.s32 %s134, %s138
          %s140 = smul.addr %s139, 128
          %s141 = scalar_lea.hbm %s0, %s140
          %s143 = sshll.u32 %s133, 4
          %s144 = int_to_ptr.vmem [resolvable:$true] %s143
          %146 = dma.hbm_to_vmem [thread:$0]  %s141, 512, %s144, %s130
        $region20: #{tpu_custom_call.1} parent=15 // pred_fallthru
          _
      $region16: #{tpu_custom_call.1} parent=5 // pred_fallthru
        _
      %p147 = scmp.le.s32.totalorder 1, %s15
      %p148 = scmp.lt.s32.totalorder %s15, 3
      %p149 = pnand %p147, %p148
      %p150 = pneg %p149
      // Predicated region
      $region21: #{tpu_custom_call.1} parent=5 // pred_check
        _
      $region22: #{tpu_custom_call.1} parent=5 // pred_check_branch
        %152 = sbr.rel (%p149) target = $region24
      $region23: #{tpu_custom_call.1} parent=5 // pred_region
        %s153 = ssub.s32 %s15, 1
        %s154 = sand.u32 %s42, 1
        %s155 = scalar_lea.sflag [#allocation3], %s154
        %s156 = sand.u32 %s42, 1
        %s157 = smul.addr %s156, 32
        %s158 = scalar_lea.vmem [#allocation2], %s157
        // Predicated region
        $region25: #{tpu_custom_call.1} parent=23 // pred_check
          %p159 = pneg %p55
        $region26: #{tpu_custom_call.1} parent=23 // pred_check_branch
          %161 = sbr.rel (%p159) target = $region28
        $region27: #{tpu_custom_call.1} parent=23 // pred_region
          %162 = dma.done %s155, 512
        $region28: #{tpu_custom_call.1} parent=23 // pred_fallthru
          _
        %s163 = sand.u32 %s42, 1
        %s164 = scalar_lea.sflag [#allocation3], %s163
        %s165 = sand.u32 %s42, 1
        %s166 = smul.addr %s165, 32
        %s167 = scalar_lea.vmem [#allocation2], %s166
        %p168 = pneg %p55
        %p169 = pneg %p52
        %p170 = pneg %p81
        %p171 = pneg %p78
        %p172 = scmp.lt.s32.totalorder %s24, 1
        %s173 = scalar_select %p172, %s24, 1
        %s174 = smul.addr %s173, 8
        %s175 = scalar_lea.vmem %s1, %s174
        %p176 = pneg %p107
        %p177 = pneg %p104
        %s178 = sand.u32 %s94, 1
        %s179 = scalar_lea.sflag [#allocation4], %s178
        %s180 = sand.u32 %s94, 1
        %s181 = smul.addr %s180, 8
        %s182 = scalar_lea.vmem [#allocation5], %s181
        %s183 = smul.u32 4, %s25
        %p184 = scmp.lt.s32.totalorder %s24, 1
        %s185 = scalar_select %p184, %s24, 1
        %s186 = smul.addr %s185, 8
        %s187 = scalar_lea.vmem %s1, %s186
        %p188 = scmp.eq.s32.totalorder %s25, 0
        // Predicated region
        $region29: #{tpu_custom_call.1} parent=23 // pred_check
          %p189 = pneg %p188
        $region30: #{tpu_custom_call.1} parent=23 // pred_check_branch
          %191 = sbr.rel (%p189) target = $region32
        $region31: #{tpu_custom_call.1} parent=23 // pred_region
          %vm192 = vcmask 7168
          %193 = vst.msk [vmem:[%s187] sm:$0xff] %vm192, 0.0
          %vm194 = vcmask 64512
          %195 = vst.msk [vmem:[%s182] sm:$0xff] %vm194, 0.0
        $region32: #{tpu_custom_call.1} parent=23 // pred_fallthru
          _
        %v196 = vld [vmem:[%s158] sm:$0xff]
        %v197 = vld [vmem:[%s158 + $0x8] sm:$0xff]
        %v198 = vld [vmem:[%s158 + $0x10] sm:$0xff]
        %v199 = vld [vmem:[%s158 + $0x18] sm:$0xff]
        %v200 = vld [vmem:[%s187] sm:$0xff]
        %v201 = vadd.f32 %v196, %v197
        %v202 = vadd.f32 %v201, %v198
        %v203 = vadd.f32 %v202, %v199
        %204 = vadd.xlane.f32.xlu0 %v203
        %v205 = vpop.xlane.xlu0 %204
        %v206 = vadd.f32 %v200, %v205
        %vm207 = vcmask 7168
        %208 = vst.msk [vmem:[%s187] sm:$0xff] %vm207, %v206
        %v209 = vld [vmem:[%s182] sm:$0xff]
        %210 = vmatprep.subr.mxu0 0.0
        %211 = vmatpush1.xpose.msra.mxu0 0.0
        %212 = vmatprep.subr.mxu0 0.0
        %213 = vmatpush1.xpose.msra.mxu0 0.0
        %214 = vmatprep.subr.mxu0 0.0
        %215 = vmatpush1.xpose.msra.mxu0 0.0
        %216 = vmatprep.subr.mxu0 0.0
        %217 = vmatpush1.xpose.msra.mxu0 0.0
        %218 = vmatprep.subr.mxu0 0.0
        %219 = vmatpush1.xpose.msra.mxu0 0.0
        %220 = vmatprep.subr.mxu0 0.0
        %221 = vmatpush1.xpose.msra.mxu0 0.0
        %222 = vmatprep.subr.mxu0 0.0
        %223 = vmatpush1.xpose.msra.mxu0 0.0
        %224 = vmatprep.subr.mxu0 0.0
        %225 = vmatpush1.xpose.msra.mxu0 0.0
        %226 = vmatprep.subr.mxu0 0.0
        %227 = vmatpush1.xpose.msra.mxu0 0.0
        %228 = vmatprep.subr.mxu0 0.0
        %229 = vmatpush1.xpose.msra.mxu0 0.0
        %230 = vmatprep.subr.mxu0 0.0
        %231 = vmatpush1.xpose.msra.mxu0 0.0
        %232 = vmatprep.subr.mxu0 0.0
        %233 = vmatpush1.xpose.msra.mxu0 0.0
        %234 = vmatprep.subr.mxu0 0.0
        %235 = vmatpush1.xpose.msra.mxu0 0.0
        %236 = vmatprep.subr.mxu0 0.0
        %237 = vmatpush1.xpose.msra.mxu0 0.0
        %238 = vmatprep.subr.mxu0 0.0
        %239 = vmatpush1.xpose.msra.mxu0 0.0
        %240 = vmatprep.subr.mxu0 %v197
        %241 = vmatpush1.xpose.msra.mxu0 %v196
        %242 = vmatprep.subr.mxu0 0.0
        %243 = vmatpush2.xpose.msra.mxu0 0.0
        %244 = vmatprep.subr.mxu0 0.0
        %245 = vmatpush2.xpose.msra.mxu0 0.0
        %246 = vmatprep.subr.mxu0 0.0
        %247 = vmatpush2.xpose.msra.mxu0 0.0
        %248 = vmatprep.subr.mxu0 0.0
        %249 = vmatpush2.xpose.msra.mxu0 0.0
        %250 = vmatprep.subr.mxu0 0.0
        %251 = vmatpush2.xpose.msra.mxu0 0.0
        %252 = vmatprep.subr.mxu0 0.0
        %253 = vmatpush2.xpose.msra.mxu0 0.0
        %254 = vmatprep.subr.mxu0 0.0
        %255 = vmatpush2.xpose.msra.mxu0 0.0
        %256 = vmatprep.subr.mxu0 0.0
        %257 = vmatpush2.xpose.msra.mxu0 0.0
        %258 = vmatprep.subr.mxu0 0.0
        %259 = vmatpush2.xpose.msra.mxu0 0.0
        %260 = vmatprep.subr.mxu0 0.0
        %261 = vmatpush2.xpose.msra.mxu0 0.0
        %262 = vmatprep.subr.mxu0 0.0
        %263 = vmatpush2.xpose.msra.mxu0 0.0
        %264 = vmatprep.subr.mxu0 0.0
        %265 = vmatpush2.xpose.msra.mxu0 0.0
        %266 = vmatprep.subr.mxu0 0.0
        %267 = vmatpush2.xpose.msra.mxu0 0.0
        %268 = vmatprep.subr.mxu0 0.0
        %269 = vmatpush2.xpose.msra.mxu0 0.0
        %270 = vmatprep.subr.mxu0 0.0
        %271 = vmatpush2.xpose.msra.mxu0 0.0
        %272 = vmatprep.subr.mxu0 0.0
        %273 = vmatpush2.xpose.msra.mxu0 0.0
        %274 = vmatprep.mubr.f32.mxu0 %v197
        %275 = vmatmul.mubr.f32.gmra.mxu0 %v196
        %v276 = vpop.f32.mrf.mxu0
        %v277 = vadd.f32 0.0, %v276
        %v278 = vpop.f32.mrf.mxu0
        %279 = vdwg.mxu0
        %280 = vmatprep.subr.mxu0 0.0
        %281 = vmatpush1.xpose.msra.mxu0 0.0
        %282 = vmatprep.subr.mxu0 0.0
        %283 = vmatpush1.xpose.msra.mxu0 0.0
        %284 = vmatprep.subr.mxu0 0.0
        %285 = vmatpush1.xpose.msra.mxu0 0.0
        %286 = vmatprep.subr.mxu0 0.0
        %287 = vmatpush1.xpose.msra.mxu0 0.0
        %288 = vmatprep.subr.mxu0 0.0
        %289 = vmatpush1.xpose.msra.mxu0 0.0
        %290 = vmatprep.subr.mxu0 0.0
        %291 = vmatpush1.xpose.msra.mxu0 0.0
        %292 = vmatprep.subr.mxu0 0.0
        %293 = vmatpush1.xpose.msra.mxu0 0.0
        %294 = vmatprep.subr.mxu0 0.0
        %295 = vmatpush1.xpose.msra.mxu0 0.0
        %296 = vmatprep.subr.mxu0 0.0
        %297 = vmatpush1.xpose.msra.mxu0 0.0
        %298 = vmatprep.subr.mxu0 0.0
        %299 = vmatpush1.xpose.msra.mxu0 0.0
        %300 = vmatprep.subr.mxu0 0.0
        %301 = vmatpush1.xpose.msra.mxu0 0.0
        %302 = vmatprep.subr.mxu0 0.0
        %303 = vmatpush1.xpose.msra.mxu0 0.0
        %304 = vmatprep.subr.mxu0 0.0
        %305 = vmatpush1.xpose.msra.mxu0 0.0
        %306 = vmatprep.subr.mxu0 0.0
        %307 = vmatpush1.xpose.msra.mxu0 0.0
        %308 = vmatprep.subr.mxu0 0.0
        %309 = vmatpush1.xpose.msra.mxu0 0.0
        %310 = vmatprep.subr.mxu0 %v199
        %311 = vmatpush1.xpose.msra.mxu0 %v198
        %312 = vmatprep.subr.mxu0 0.0
        %313 = vmatpush2.xpose.msra.mxu0 0.0
        %314 = vmatprep.subr.mxu0 0.0
        %315 = vmatpush2.xpose.msra.mxu0 0.0
        %316 = vmatprep.subr.mxu0 0.0
        %317 = vmatpush2.xpose.msra.mxu0 0.0
        %318 = vmatprep.subr.mxu0 0.0
        %319 = vmatpush2.xpose.msra.mxu0 0.0
        %320 = vmatprep.subr.mxu0 0.0
        %321 = vmatpush2.xpose.msra.mxu0 0.0
        %322 = vmatprep.subr.mxu0 0.0
        %323 = vmatpush2.xpose.msra.mxu0 0.0
        %324 = vmatprep.subr.mxu0 0.0
        %325 = vmatpush2.xpose.msra.mxu0 0.0
        %326 = vmatprep.subr.mxu0 0.0
        %327 = vmatpush2.xpose.msra.mxu0 0.0
        %328 = vmatprep.subr.mxu0 0.0
        %329 = vmatpush2.xpose.msra.mxu0 0.0
        %330 = vmatprep.subr.mxu0 0.0
        %331 = vmatpush2.xpose.msra.mxu0 0.0
        %332 = vmatprep.subr.mxu0 0.0
        %333 = vmatpush2.xpose.msra.mxu0 0.0
        %334 = vmatprep.subr.mxu0 0.0
        %335 = vmatpush2.xpose.msra.mxu0 0.0
        %336 = vmatprep.subr.mxu0 0.0
        %337 = vmatpush2.xpose.msra.mxu0 0.0
        %338 = vmatprep.subr.mxu0 0.0
        %339 = vmatpush2.xpose.msra.mxu0 0.0
        %340 = vmatprep.subr.mxu0 0.0
        %341 = vmatpush2.xpose.msra.mxu0 0.0
        %342 = vmatprep.subr.mxu0 0.0
        %343 = vmatpush2.xpose.msra.mxu0 0.0
        %344 = vmatprep.mubr.f32.mxu0 %v199
        %345 = vmatmul.mubr.f32.gmra.mxu0 %v198
        %v346 = vpop.f32.mrf.mxu0
        %v347 = vadd.f32 %v277, %v346
        %v348 = vpop.f32.mrf.mxu0
        %349 = vdwg.mxu0
        %v350 = vadd.f32 %v209, %v347
        %vm351 = vcmask 64512
        %352 = vst.msk [vmem:[%s182] sm:$0xff] %vm351, %v350
        %p353 = scmp.lt.s32.totalorder %s24, 1
        %s354 = scalar_select %p353, %s24, 1
        %s355 = smul.addr %s354, 8
        %s356 = scalar_lea.vmem %s1, %s355
        %s357 = sand.u32 %s94, 1
        %s358 = scalar_lea.sflag [#allocation4], %s357
        %s359 = sand.u32 %s94, 1
        %s360 = smul.addr %s359, 8
        %s361 = scalar_lea.vmem [#allocation5], %s360
        // Predicated region
        $region33: #{tpu_custom_call.1} parent=23 // pred_check
          %p362 = pneg %p78
        $region34: #{tpu_custom_call.1} parent=23 // pred_check_branch
          %364 = sbr.rel (%p362) target = $region36
        $region35: #{tpu_custom_call.1} parent=23 // pred_region
          _
        $region36: #{tpu_custom_call.1} parent=23 // pred_fallthru
          _
        // Predicated region
        $region37: #{tpu_custom_call.1} parent=23 // pred_check
          %p365 = pneg %p104
        $region38: #{tpu_custom_call.1} parent=23 // pred_check_branch
          %367 = sbr.rel (%p365) target = $region40
        $region39: #{tpu_custom_call.1} parent=23 // pred_region
          %s369 = ssub.s32 128, 128
          %370 = vsyncadd %s358, %s369
          %s371 = smul.addr %s24, 128
          %s372 = scalar_lea.hbm %s2, %s371
          %s374 = sshll.u32 %s361, 4
          %s375 = int_to_ptr.vmem [resolvable:$true] %s374
          %377 = dma.vmem_to_hbm [thread:$0]  %s375, 128, %s372, %s358
        $region40: #{tpu_custom_call.1} parent=23 // pred_fallthru
          _
      $region24: #{tpu_custom_call.1} parent=5 // pred_fallthru
        _
      %p378 = scmp.le.s32.totalorder 2, %s15
      // Predicated region
      $region41: #{tpu_custom_call.1} parent=5 // pred_check
        %p379 = pneg %p378
      $region42: #{tpu_custom_call.1} parent=5 // pred_check_branch
        %381 = sbr.rel (%p379) target = $region44
      $region43: #{tpu_custom_call.1} parent=5 // pred_region
        %s382 = ssub.s32 %s15, 2
        // Predicated region
        $region45: #{tpu_custom_call.1} parent=43 // pred_check
          %p383 = pneg %p84
        $region46: #{tpu_custom_call.1} parent=43 // pred_check_branch
          %385 = sbr.rel (%p383) target = $region48
        $region47: #{tpu_custom_call.1} parent=43 // pred_region
          %p386 = scmp.lt.s32.totalorder %s26, 1
          %s387 = scalar_select %p386, %s26, 1
          %s388 = smul.addr %s387, 8
          %s389 = scalar_lea.vmem %s1, %s388
        $region48: #{tpu_custom_call.1} parent=43 // pred_fallthru
          _
        // Predicated region
        $region49: #{tpu_custom_call.1} parent=43 // pred_check
          %p390 = pneg %p110
        $region50: #{tpu_custom_call.1} parent=43 // pred_check_branch
          %392 = sbr.rel (%p390) target = $region52
        $region51: #{tpu_custom_call.1} parent=43 // pred_region
          %s393 = sand.u32 %s95, 1
          %s394 = scalar_lea.sflag [#allocation4], %s393
          %s395 = sand.u32 %s95, 1
          %s396 = smul.addr %s395, 8
          %s397 = scalar_lea.vmem [#allocation5], %s396
          %398 = dma.done %s394, 128
        $region52: #{tpu_custom_call.1} parent=43 // pred_fallthru
          _
      $region44: #{tpu_custom_call.1} parent=5 // pred_fallthru
        _
    $region6: #{tpu_custom_call.1} parent=1 // loop_footer
      %s19 = sadd.s32 1, %s15
    $region7: #{tpu_custom_call.1} parent=1 // loop_footer_branch
      %14 = sbr.rel target = $region3
    $region8: #{tpu_custom_call.1} parent=1 // loop_exit
      _
    %399 = vsyncpa [#allocation3], 1
    %s400 = scalar_lea.sflag [#allocation3], 1
    %401 = vsyncpa %s400, 1
    %402 = vsyncpa [#allocation4], 1
    %s403 = scalar_lea.sflag [#allocation4], 1
    %404 = vsyncpa %s403, 1

</llo_original>
